<compile_context>
chip_gen: v5e
topology: v5e:2x2
jax: 0.10.0
libtpu: 0.0.40
codegen_flags: <defaults>
</compile_context>

<pallas_src>
import functools
import math

import jax
import jax.numpy as jnp
from jax.experimental import pallas as pl
from jax.experimental.pallas import tpu as pltpu

TWO_PI = 2 * 3.1415927410125732  # matches the PyTorch constant exactly


# ----------------------------------------------------------------------------
# Kernel
# ----------------------------------------------------------------------------
def pcond_kernel(x_ref, mu_ref, sg_ref, out_ref, *, T, nbins, chunk, bc,
                 neg_half_inv_var, log_sqrt_2pi):
    """log p_t(x^{t-1} | x^t) for one lane-dense batch tile.

    x_ref   : (T+1, B_TILE)  time-major x; row t holds x^t (lane axis = batch)
    mu_ref  : (T, nbins)     mu_components    * pdf_coeff  (resident)
    sg_ref  : (T, nbins)     sigma_components * pdf_coeff  (resident)
    out_ref : (T, B_TILE)    log densities
    """
    mu = mu_ref[...]
    sg = sg_ref[...]
    n_chunks = out_ref.shape[1] // chunk

    # Non-unrolled lane-chunk loop: bounds the live vregs to ~3 chunk-sized
    # accumulators regardless of B_TILE, so a big grid tile amortises the
    # per-grid-step overhead without vreg spills in the unrolled nbins body.
    @pl.loop(0, n_chunks)
    def _(ci):
        off = pl.multiple_of(ci * chunk, chunk)
        xcond = x_ref[pl.ds(1, T), pl.ds(off, chunk)]        # x^t
        acc_mean = jnp.zeros_like(xcond)                     # p_residual_mean
        acc_lsig = jnp.zeros_like(xcond)                     # p_log_sigma

        # Unrolled over the small static mixture.  bc[n] and
        # neg_half_inv_var are Python constants; pdf_coeff is folded into
        # mu/sg host-side, so per bin: 3 VALU (arg) + 1 EUP exp + 4 VALU.
        for n in range(nbins):
            u = xcond - bc[n]
            comp = jnp.exp((u * neg_half_inv_var) * u)       # pdf sans coeff
            acc_mean = acc_mean + mu[:, n:n + 1] * comp      # (T,1) lane-bcast
            acc_lsig = acc_lsig + sg[:, n:n + 1] * comp

        xvar = x_ref[pl.ds(0, T), pl.ds(off, chunk)]         # x^{t-1}
        inv_sigma = jnp.exp(-acc_lsig)                       # 1/p_sigma (EUP)
        d = (xvar - (xcond + acc_mean)) * inv_sigma
        out_ref[:, pl.ds(off, chunk)] = (
            -acc_lsig - log_sqrt_2pi - 0.5 * (d * d))


# ----------------------------------------------------------------------------
# Parameter init (identical to PCond.__init__) + pure-JAX reference
# ----------------------------------------------------------------------------
def normal_pdf(x, mu, sigma):
    scaled_dist = (x - mu) / sigma
    expon = -0.5 * scaled_dist ** 2
    sqrt_2pi = jnp.sqrt(jnp.float32(TWO_PI))
    return (sigma * sqrt_2pi) ** (-1) * jnp.exp(expon)


def make_pcond_params(nbins, T):
    bin_centers = jnp.linspace(-0.2, 1.2, nbins, dtype=jnp.float32)
    comp_sigma = 10.0 * nbins ** (-1)
    mu_components = jnp.zeros((T, nbins), dtype=jnp.float32)
    vals = normal_pdf(jnp.float32(0.0), bin_centers, jnp.float32(comp_sigma))
    norm = float(jnp.sum(vals))
    init_val = -3.0 * norm ** (-1)
    sigma_components = jnp.full((T, nbins), init_val, dtype=jnp.float32)
    return bin_centers, comp_sigma, mu_components, sigma_components


def pcond_forward_ref(x, bin_centers, comp_sigma, mu_components,
                      sigma_components):
    xvar, xcond = x[:, :-1], x[:, 1:]
    comp_means = bin_centers.reshape(1, 1, -1)
    comp_vals = normal_pdf(xcond[..., None], comp_means, jnp.float32(comp_sigma))
    p_residual_mean = jnp.sum(mu_components[None] * comp_vals, axis=-1)
    p_log_sigma = jnp.sum(sigma_components[None] * comp_vals, axis=-1)
    p_mean = xcond + p_residual_mean
    p_sigma = jnp.exp(p_log_sigma)
    scaled_dist = (xvar - p_mean) / p_sigma
    p_expon = -0.5 * scaled_dist ** 2
    log_sqrt_2pi = 0.5 * jnp.log(jnp.float32(TWO_PI))
    return -p_log_sigma - log_sqrt_2pi + p_expon


# ----------------------------------------------------------------------------
# Wrapper
# ----------------------------------------------------------------------------
def _round_up(a, b):
    return ((a + b - 1) // b) * b


def _pick_b_tiling(B, T, b_tile_max):
    """Batch-tile / padded-batch size, generation-aware."""
    b128 = _round_up(B, 128)
    # Double-buffered in + out f32 bytes per lane; cap the tile so per-step
    # VMEM stays ~<=12 MiB (fits v5e's 16 MiB default scope, v7x's 64 MiB).
    per_lane_bytes = 4 * 2 * ((T + 1) + T)
    vmem_cap_lanes = max(128, ((12 << 20) // per_lane_bytes) // 128 * 128)
    tile = min(_round_up(b_tile_max, 128), b128, vmem_cap_lanes)
    # Prefer >=2 grid steps: gives the pipeline something to overlap and lets
    # v7x shard the "parallel" batch axis across its two TensorCores.
    if tile == b128 and b128 >= 256:
        tile = max(128, _round_up(b128 // 2, 128))
    b_pad = _round_up(B, tile)
    return tile, b_pad


def _pick_chunk(b_tile):
    for c in (512, 256, 128):
        if b_tile % c == 0:
            return c
    return b_tile


def pcond_forward(x, bin_centers, comp_sigma, mu_components, sigma_components,
                  *, b_tile_max=4096):
    """PCond.forward: x (B, T+1) -> log densities (B, T)."""
    B, Tp1 = x.shape
    T, nbins = mu_components.shape
    assert Tp1 == T + 1

    comp_sigma = float(comp_sigma)
    pdf_coeff = float(1.0 / (comp_sigma * math.sqrt(TWO_PI)))
    neg_half_inv_var = float(-0.5 / (comp_sigma * comp_sigma))
    log_sqrt_2pi = float(0.5 * math.log(TWO_PI))

    # Bin centers are a deterministic module buffer -> bake them in as Python
    # float constants (no SMEM table, no per-bin scalar loads / splats).
    bc = tuple(float(v) for v in jax.device_get(bin_centers))

    # Fold the constant Gaussian pdf coefficient into the mixture weights so
    # the kernel's per-bin loop drops a multiply.
    mu_s = mu_components.astype(jnp.float32) * pdf_coeff
    sg_s = sigma_components.astype(jnp.float32) * pdf_coeff

    # Lane-dense time-major layout; single shared (T+1, B) input tile, sliced
    # into xvar / xcond inside the kernel.
    x_t = x.astype(jnp.float32).T                    # (T+1, B)

    b_tile, b_pad = _pick_b_tiling(B, T, b_tile_max)
    chunk = _pick_chunk(b_tile)
    if b_pad != B:
        x_t = jnp.pad(x_t, ((0, 0), (0, b_pad - B)))

    kernel = functools.partial(
        pcond_kernel,
        T=T, nbins=nbins, chunk=chunk, bc=bc,
        neg_half_inv_var=neg_half_inv_var, log_sqrt_2pi=log_sqrt_2pi,
    )

    out_t = pl.pallas_call(
        kernel,
        out_shape=jax.ShapeDtypeStruct((T, b_pad), jnp.float32),
        grid=(b_pad // b_tile,),
        in_specs=[
            pl.BlockSpec((Tp1, b_tile), lambda i: (0, i)),   # x (time-major)
            pl.BlockSpec((T, nbins), lambda i: (0, 0)),      # mu (resident)
            pl.BlockSpec((T, nbins), lambda i: (0, 0)),      # sigma (resident)
        ],
        out_specs=pl.BlockSpec((T, b_tile), lambda i: (0, i)),
        compiler_params=pltpu.CompilerParams(
            dimension_semantics=("parallel",),
            vmem_limit_bytes=32 * 1024 * 1024,
        ),
        cost_estimate=pl.CostEstimate(
            flops=B * T * (7 * nbins + 8),
            transcendentals=B * T * (nbins + 1),
            bytes_accessed=4 * (B * (2 * T + 1) + 2 * T * nbins),
        ),
    )(x_t, mu_s, sg_s)

    return out_t[:, :B].T                            # back to (B, T)


# ----------------------------------------------------------------------------
# Self-test
# ----------------------------------------------------------------------------
if __name__ == "__main__":
    nbins = 32
    T = 8
    B = 8

    bin_centers, comp_sigma, mu_components, sigma_components = \
        make_pcond_params(nbins, T)

    key = jax.random.PRNGKey(0)
    kx, km, kx2 = jax.random.split(key, 3)
    # Perturb mu so the mean path is exercised too (init is all-zeros).
    mu_components = mu_components + 0.1 * jax.random.normal(
        km, mu_components.shape, dtype=jnp.float32)

    # Small case: single 128-lane tile.
    x = jax.random.normal(kx, (B, T + 1), dtype=jnp.float32)
    out = jax.block_until_ready(
        pcond_forward(x, bin_centers, comp_sigma, mu_components,
                      sigma_components))
    ref = pcond_forward_ref(x, bin_centers, comp_sigma, mu_components,
                            sigma_components)
    assert out.shape == (B, T)
    assert jnp.allclose(out, ref, atol=1e-5, rtol=1e-5), (out, ref)

    # Larger, non-multiple-of-128 batch: exercises padding and a >=2-step
    # parallel grid (the v7x dual-TC path).
    B2 = 300
    x2 = jax.random.normal(kx2, (B2, T + 1), dtype=jnp.float32)
    out2 = jax.block_until_ready(
        pcond_forward(x2, bin_centers, comp_sigma, mu_components,
                      sigma_components))
    ref2 = pcond_forward_ref(x2, bin_centers, comp_sigma, mu_components,
                             sigma_components)
    assert out2.shape == (B2, T)
    assert jnp.allclose(out2, ref2, atol=1e-5, rtol=1e-5)

    print("KERNEL_OK")
</pallas_src>

<mosaic_0001>
module attributes {stable_mosaic.version = 11 : i64} {
  func.func @pcond_kernel(%arg0: i32, %arg1: memref<9x128xf32, #tpu.memory_space<vmem>>, %arg2: memref<8x32xf32, #tpu.memory_space<vmem>>, %arg3: memref<8x32xf32, #tpu.memory_space<vmem>>, %arg4: memref<8x128xf32, #tpu.memory_space<vmem>>) attributes {dimension_semantics = [#tpu.dimension_semantics<parallel>], iteration_bounds = array<i64: 1>, scalar_prefetch = 0 : i64, scratch_operands = 0 : i64, tpu.core_type = #tpu.core_type<tc>, window_params = [{transform_indices = @transform_0, window_bounds = array<i64: 9, 128>}, {pipeline_mode = #tpu.pipeline_mode<synchronous>, transform_indices = @transform_1, window_bounds = array<i64: 8, 32>}, {pipeline_mode = #tpu.pipeline_mode<synchronous>, transform_indices = @transform_2, window_bounds = array<i64: 8, 32>}, {transform_indices = @transform_3, window_bounds = array<i64: 8, 128>}]} {
    %c0 = arith.constant 0 : index
    %c0_0 = arith.constant 0 : index
    %0 = vector.load %arg2[%c0, %c0_0] : memref<8x32xf32, #tpu.memory_space<vmem>>, vector<8x32xf32>
    %c0_1 = arith.constant 0 : index
    %c0_2 = arith.constant 0 : index
    %1 = vector.load %arg3[%c0_1, %c0_2] : memref<8x32xf32, #tpu.memory_space<vmem>>, vector<8x32xf32>
    %c0_i32 = arith.constant 0 : i32
    %c1_i32 = arith.constant 1 : i32
    %2 = arith.muli %c0_i32, %c1_i32 : i32
    %c0_i32_3 = arith.constant 0 : i32
    %3 = arith.addi %c0_i32_3, %2 : i32
    %c128_i32 = arith.constant 128 : i32
    %4 = arith.muli %3, %c128_i32 : i32
    %5 = tpu.assume_multiple %4, 128 : i32
    %c1 = arith.constant 1 : index
    %6 = arith.index_cast %5 : i32 to index
    %7 = vector.load %arg1[%c1, %6] : memref<9x128xf32, #tpu.memory_space<vmem>>, vector<8x128xf32>
    %cst = arith.constant 0.000000e+00 : f32
    %8 = vector.broadcast %cst : f32 to vector<8x128xf32>
    %cst_4 = arith.constant 0.000000e+00 : f32
    %9 = vector.broadcast %cst_4 : f32 to vector<8x128xf32>
    %cst_5 = arith.constant -2.000000e-01 : f32
    %10 = vector.broadcast %cst_5 : f32 to vector<8x128xf32>
    %11 = arith.subf %7, %10 : vector<8x128xf32>
    %cst_6 = arith.constant -5.120000e+00 : f32
    %12 = vector.broadcast %cst_6 : f32 to vector<8x128xf32>
    %13 = arith.mulf %11, %12 : vector<8x128xf32>
    %14 = arith.mulf %13, %11 : vector<8x128xf32>
    %15 = math.exp %14 : vector<8x128xf32>
    %16 = vector.extract_strided_slice %0 {offsets = [0, 0], sizes = [8, 1], strides = [1, 1]} : vector<8x32xf32> to vector<8x1xf32>
    %17 = vector.broadcast %16 : vector<8x1xf32> to vector<8x128xf32>
    %18 = arith.mulf %17, %15 : vector<8x128xf32>
    %19 = arith.addf %8, %18 : vector<8x128xf32>
    %20 = vector.extract_strided_slice %1 {offsets = [0, 0], sizes = [8, 1], strides = [1, 1]} : vector<8x32xf32> to vector<8x1xf32>
    %21 = vector.broadcast %20 : vector<8x1xf32> to vector<8x128xf32>
    %22 = arith.mulf %21, %15 : vector<8x128xf32>
    %23 = arith.addf %9, %22 : vector<8x128xf32>
    %cst_7 = arith.constant -0.154838711 : f32
    %24 = vector.broadcast %cst_7 : f32 to vector<8x128xf32>
    %25 = arith.subf %7, %24 : vector<8x128xf32>
    %cst_8 = arith.constant -5.120000e+00 : f32
    %26 = vector.broadcast %cst_8 : f32 to vector<8x128xf32>
    %27 = arith.mulf %25, %26 : vector<8x128xf32>
    %28 = arith.mulf %27, %25 : vector<8x128xf32>
    %29 = math.exp %28 : vector<8x128xf32>
    %30 = vector.extract_strided_slice %0 {offsets = [0, 1], sizes = [8, 1], strides = [1, 1]} : vector<8x32xf32> to vector<8x1xf32>
    %31 = vector.broadcast %30 : vector<8x1xf32> to vector<8x128xf32>
    %32 = arith.mulf %31, %29 : vector<8x128xf32>
    %33 = arith.addf %19, %32 : vector<8x128xf32>
    %34 = vector.extract_strided_slice %1 {offsets = [0, 1], sizes = [8, 1], strides = [1, 1]} : vector<8x32xf32> to vector<8x1xf32>
    %35 = vector.broadcast %34 : vector<8x1xf32> to vector<8x128xf32>
    %36 = arith.mulf %35, %29 : vector<8x128xf32>
    %37 = arith.addf %23, %36 : vector<8x128xf32>
    %cst_9 = arith.constant -0.109677419 : f32
    %38 = vector.broadcast %cst_9 : f32 to vector<8x128xf32>
    %39 = arith.subf %7, %38 : vector<8x128xf32>
    %cst_10 = arith.constant -5.120000e+00 : f32
    %40 = vector.broadcast %cst_10 : f32 to vector<8x128xf32>
    %41 = arith.mulf %39, %40 : vector<8x128xf32>
    %42 = arith.mulf %41, %39 : vector<8x128xf32>
    %43 = math.exp %42 : vector<8x128xf32>
    %44 = vector.extract_strided_slice %0 {offsets = [0, 2], sizes = [8, 1], strides = [1, 1]} : vector<8x32xf32> to vector<8x1xf32>
    %45 = vector.broadcast %44 : vector<8x1xf32> to vector<8x128xf32>
    %46 = arith.mulf %45, %43 : vector<8x128xf32>
    %47 = arith.addf %33, %46 : vector<8x128xf32>
    %48 = vector.extract_strided_slice %1 {offsets = [0, 2], sizes = [8, 1], strides = [1, 1]} : vector<8x32xf32> to vector<8x1xf32>
    %49 = vector.broadcast %48 : vector<8x1xf32> to vector<8x128xf32>
    %50 = arith.mulf %49, %43 : vector<8x128xf32>
    %51 = arith.addf %37, %50 : vector<8x128xf32>
    %cst_11 = arith.constant -0.0645161197 : f32
    %52 = vector.broadcast %cst_11 : f32 to vector<8x128xf32>
    %53 = arith.subf %7, %52 : vector<8x128xf32>
    %cst_12 = arith.constant -5.120000e+00 : f32
    %54 = vector.broadcast %cst_12 : f32 to vector<8x128xf32>
    %55 = arith.mulf %53, %54 : vector<8x128xf32>
    %56 = arith.mulf %55, %53 : vector<8x128xf32>
    %57 = math.exp %56 : vector<8x128xf32>
    %58 = vector.extract_strided_slice %0 {offsets = [0, 3], sizes = [8, 1], strides = [1, 1]} : vector<8x32xf32> to vector<8x1xf32>
    %59 = vector.broadcast %58 : vector<8x1xf32> to vector<8x128xf32>
    %60 = arith.mulf %59, %57 : vector<8x128xf32>
    %61 = arith.addf %47, %60 : vector<8x128xf32>
    %62 = vector.extract_strided_slice %1 {offsets = [0, 3], sizes = [8, 1], strides = [1, 1]} : vector<8x32xf32> to vector<8x1xf32>
    %63 = vector.broadcast %62 : vector<8x1xf32> to vector<8x128xf32>
    %64 = arith.mulf %63, %57 : vector<8x128xf32>
    %65 = arith.addf %51, %64 : vector<8x128xf32>
    %cst_13 = arith.constant -0.0193548352 : f32
    %66 = vector.broadcast %cst_13 : f32 to vector<8x128xf32>
    %67 = arith.subf %7, %66 : vector<8x128xf32>
    %cst_14 = arith.constant -5.120000e+00 : f32
    %68 = vector.broadcast %cst_14 : f32 to vector<8x128xf32>
    %69 = arith.mulf %67, %68 : vector<8x128xf32>
    %70 = arith.mulf %69, %67 : vector<8x128xf32>
    %71 = math.exp %70 : vector<8x128xf32>
    %72 = vector.extract_strided_slice %0 {offsets = [0, 4], sizes = [8, 1], strides = [1, 1]} : vector<8x32xf32> to vector<8x1xf32>
    %73 = vector.broadcast %72 : vector<8x1xf32> to vector<8x128xf32>
    %74 = arith.mulf %73, %71 : vector<8x128xf32>
    %75 = arith.addf %61, %74 : vector<8x128xf32>
    %76 = vector.extract_strided_slice %1 {offsets = [0, 4], sizes = [8, 1], strides = [1, 1]} : vector<8x32xf32> to vector<8x1xf32>
    %77 = vector.broadcast %76 : vector<8x1xf32> to vector<8x128xf32>
    %78 = arith.mulf %77, %71 : vector<8x128xf32>
    %79 = arith.addf %65, %78 : vector<8x128xf32>
    %cst_15 = arith.constant 0.0258064494 : f32
    %80 = vector.broadcast %cst_15 : f32 to vector<8x128xf32>
    %81 = arith.subf %7, %80 : vector<8x128xf32>
    %cst_16 = arith.constant -5.120000e+00 : f32
    %82 = vector.broadcast %cst_16 : f32 to vector<8x128xf32>
    %83 = arith.mulf %81, %82 : vector<8x128xf32>
    %84 = arith.mulf %83, %81 : vector<8x128xf32>
    %85 = math.exp %84 : vector<8x128xf32>
    %86 = vector.extract_strided_slice %0 {offsets = [0, 5], sizes = [8, 1], strides = [1, 1]} : vector<8x32xf32> to vector<8x1xf32>
    %87 = vector.broadcast %86 : vector<8x1xf32> to vector<8x128xf32>
    %88 = arith.mulf %87, %85 : vector<8x128xf32>
    %89 = arith.addf %75, %88 : vector<8x128xf32>
    %90 = vector.extract_strided_slice %1 {offsets = [0, 5], sizes = [8, 1], strides = [1, 1]} : vector<8x32xf32> to vector<8x1xf32>
    %91 = vector.broadcast %90 : vector<8x1xf32> to vector<8x128xf32>
    %92 = arith.mulf %91, %85 : vector<8x128xf32>
    %93 = arith.addf %79, %92 : vector<8x128xf32>
    %cst_17 = arith.constant 0.0709677339 : f32
    %94 = vector.broadcast %cst_17 : f32 to vector<8x128xf32>
    %95 = arith.subf %7, %94 : vector<8x128xf32>
    %cst_18 = arith.constant -5.120000e+00 : f32
    %96 = vector.broadcast %cst_18 : f32 to vector<8x128xf32>
    %97 = arith.mulf %95, %96 : vector<8x128xf32>
    %98 = arith.mulf %97, %95 : vector<8x128xf32>
    %99 = math.exp %98 : vector<8x128xf32>
    %100 = vector.extract_strided_slice %0 {offsets = [0, 6], sizes = [8, 1], strides = [1, 1]} : vector<8x32xf32> to vector<8x1xf32>
    %101 = vector.broadcast %100 : vector<8x1xf32> to vector<8x128xf32>
    %102 = arith.mulf %101, %99 : vector<8x128xf32>
    %103 = arith.addf %89, %102 : vector<8x128xf32>
    %104 = vector.extract_strided_slice %1 {offsets = [0, 6], sizes = [8, 1], strides = [1, 1]} : vector<8x32xf32> to vector<8x1xf32>
    %105 = vector.broadcast %104 : vector<8x1xf32> to vector<8x128xf32>
    %106 = arith.mulf %105, %99 : vector<8x128xf32>
    %107 = arith.addf %93, %106 : vector<8x128xf32>
    %cst_19 = arith.constant 0.116129033 : f32
    %108 = vector.broadcast %cst_19 : f32 to vector<8x128xf32>
    %109 = arith.subf %7, %108 : vector<8x128xf32>
    %cst_20 = arith.constant -5.120000e+00 : f32
    %110 = vector.broadcast %cst_20 : f32 to vector<8x128xf32>
    %111 = arith.mulf %109, %110 : vector<8x128xf32>
    %112 = arith.mulf %111, %109 : vector<8x128xf32>
    %113 = math.exp %112 : vector<8x128xf32>
    %114 = vector.extract_strided_slice %0 {offsets = [0, 7], sizes = [8, 1], strides = [1, 1]} : vector<8x32xf32> to vector<8x1xf32>
    %115 = vector.broadcast %114 : vector<8x1xf32> to vector<8x128xf32>
    %116 = arith.mulf %115, %113 : vector<8x128xf32>
    %117 = arith.addf %103, %116 : vector<8x128xf32>
    %118 = vector.extract_strided_slice %1 {offsets = [0, 7], sizes = [8, 1], strides = [1, 1]} : vector<8x32xf32> to vector<8x1xf32>
    %119 = vector.broadcast %118 : vector<8x1xf32> to vector<8x128xf32>
    %120 = arith.mulf %119, %113 : vector<8x128xf32>
    %121 = arith.addf %107, %120 : vector<8x128xf32>
    %cst_21 = arith.constant 0.161290318 : f32
    %122 = vector.broadcast %cst_21 : f32 to vector<8x128xf32>
    %123 = arith.subf %7, %122 : vector<8x128xf32>
    %cst_22 = arith.constant -5.120000e+00 : f32
    %124 = vector.broadcast %cst_22 : f32 to vector<8x128xf32>
    %125 = arith.mulf %123, %124 : vector<8x128xf32>
    %126 = arith.mulf %125, %123 : vector<8x128xf32>
    %127 = math.exp %126 : vector<8x128xf32>
    %128 = vector.extract_strided_slice %0 {offsets = [0, 8], sizes = [8, 1], strides = [1, 1]} : vector<8x32xf32> to vector<8x1xf32>
    %129 = vector.broadcast %128 : vector<8x1xf32> to vector<8x128xf32>
    %130 = arith.mulf %129, %127 : vector<8x128xf32>
    %131 = arith.addf %117, %130 : vector<8x128xf32>
    %132 = vector.extract_strided_slice %1 {offsets = [0, 8], sizes = [8, 1], strides = [1, 1]} : vector<8x32xf32> to vector<8x1xf32>
    %133 = vector.broadcast %132 : vector<8x1xf32> to vector<8x128xf32>
    %134 = arith.mulf %133, %127 : vector<8x128xf32>
    %135 = arith.addf %121, %134 : vector<8x128xf32>
    %cst_23 = arith.constant 0.206451595 : f32
    %136 = vector.broadcast %cst_23 : f32 to vector<8x128xf32>
    %137 = arith.subf %7, %136 : vector<8x128xf32>
    %cst_24 = arith.constant -5.120000e+00 : f32
    %138 = vector.broadcast %cst_24 : f32 to vector<8x128xf32>
    %139 = arith.mulf %137, %138 : vector<8x128xf32>
    %140 = arith.mulf %139, %137 : vector<8x128xf32>
    %141 = math.exp %140 : vector<8x128xf32>
    %142 = vector.extract_strided_slice %0 {offsets = [0, 9], sizes = [8, 1], strides = [1, 1]} : vector<8x32xf32> to vector<8x1xf32>
    %143 = vector.broadcast %142 : vector<8x1xf32> to vector<8x128xf32>
    %144 = arith.mulf %143, %141 : vector<8x128xf32>
    %145 = arith.addf %131, %144 : vector<8x128xf32>
    %146 = vector.extract_strided_slice %1 {offsets = [0, 9], sizes = [8, 1], strides = [1, 1]} : vector<8x32xf32> to vector<8x1xf32>
    %147 = vector.broadcast %146 : vector<8x1xf32> to vector<8x128xf32>
    %148 = arith.mulf %147, %141 : vector<8x128xf32>
    %149 = arith.addf %135, %148 : vector<8x128xf32>
    %cst_25 = arith.constant 0.251612902 : f32
    %150 = vector.broadcast %cst_25 : f32 to vector<8x128xf32>
    %151 = arith.subf %7, %150 : vector<8x128xf32>
    %cst_26 = arith.constant -5.120000e+00 : f32
    %152 = vector.broadcast %cst_26 : f32 to vector<8x128xf32>
    %153 = arith.mulf %151, %152 : vector<8x128xf32>
    %154 = arith.mulf %153, %151 : vector<8x128xf32>
    %155 = math.exp %154 : vector<8x128xf32>
    %156 = vector.extract_strided_slice %0 {offsets = [0, 10], sizes = [8, 1], strides = [1, 1]} : vector<8x32xf32> to vector<8x1xf32>
    %157 = vector.broadcast %156 : vector<8x1xf32> to vector<8x128xf32>
    %158 = arith.mulf %157, %155 : vector<8x128xf32>
    %159 = arith.addf %145, %158 : vector<8x128xf32>
    %160 = vector.extract_strided_slice %1 {offsets = [0, 10], sizes = [8, 1], strides = [1, 1]} : vector<8x32xf32> to vector<8x1xf32>
    %161 = vector.broadcast %160 : vector<8x1xf32> to vector<8x128xf32>
    %162 = arith.mulf %161, %155 : vector<8x128xf32>
    %163 = arith.addf %149, %162 : vector<8x128xf32>
    %cst_27 = arith.constant 0.296774209 : f32
    %164 = vector.broadcast %cst_27 : f32 to vector<8x128xf32>
    %165 = arith.subf %7, %164 : vector<8x128xf32>
    %cst_28 = arith.constant -5.120000e+00 : f32
    %166 = vector.broadcast %cst_28 : f32 to vector<8x128xf32>
    %167 = arith.mulf %165, %166 : vector<8x128xf32>
    %168 = arith.mulf %167, %165 : vector<8x128xf32>
    %169 = math.exp %168 : vector<8x128xf32>
    %170 = vector.extract_strided_slice %0 {offsets = [0, 11], sizes = [8, 1], strides = [1, 1]} : vector<8x32xf32> to vector<8x1xf32>
    %171 = vector.broadcast %170 : vector<8x1xf32> to vector<8x128xf32>
    %172 = arith.mulf %171, %169 : vector<8x128xf32>
    %173 = arith.addf %159, %172 : vector<8x128xf32>
    %174 = vector.extract_strided_slice %1 {offsets = [0, 11], sizes = [8, 1], strides = [1, 1]} : vector<8x32xf32> to vector<8x1xf32>
    %175 = vector.broadcast %174 : vector<8x1xf32> to vector<8x128xf32>
    %176 = arith.mulf %175, %169 : vector<8x128xf32>
    %177 = arith.addf %163, %176 : vector<8x128xf32>
    %cst_29 = arith.constant 0.341935486 : f32
    %178 = vector.broadcast %cst_29 : f32 to vector<8x128xf32>
    %179 = arith.subf %7, %178 : vector<8x128xf32>
    %cst_30 = arith.constant -5.120000e+00 : f32
    %180 = vector.broadcast %cst_30 : f32 to vector<8x128xf32>
    %181 = arith.mulf %179, %180 : vector<8x128xf32>
    %182 = arith.mulf %181, %179 : vector<8x128xf32>
    %183 = math.exp %182 : vector<8x128xf32>
    %184 = vector.extract_strided_slice %0 {offsets = [0, 12], sizes = [8, 1], strides = [1, 1]} : vector<8x32xf32> to vector<8x1xf32>
    %185 = vector.broadcast %184 : vector<8x1xf32> to vector<8x128xf32>
    %186 = arith.mulf %185, %183 : vector<8x128xf32>
    %187 = arith.addf %173, %186 : vector<8x128xf32>
    %188 = vector.extract_strided_slice %1 {offsets = [0, 12], sizes = [8, 1], strides = [1, 1]} : vector<8x32xf32> to vector<8x1xf32>
    %189 = vector.broadcast %188 : vector<8x1xf32> to vector<8x128xf32>
    %190 = arith.mulf %189, %183 : vector<8x128xf32>
    %191 = arith.addf %177, %190 : vector<8x128xf32>
    %cst_31 = arith.constant 0.387096763 : f32
    %192 = vector.broadcast %cst_31 : f32 to vector<8x128xf32>
    %193 = arith.subf %7, %192 : vector<8x128xf32>
    %cst_32 = arith.constant -5.120000e+00 : f32
    %194 = vector.broadcast %cst_32 : f32 to vector<8x128xf32>
    %195 = arith.mulf %193, %194 : vector<8x128xf32>
    %196 = arith.mulf %195, %193 : vector<8x128xf32>
    %197 = math.exp %196 : vector<8x128xf32>
    %198 = vector.extract_strided_slice %0 {offsets = [0, 13], sizes = [8, 1], strides = [1, 1]} : vector<8x32xf32> to vector<8x1xf32>
    %199 = vector.broadcast %198 : vector<8x1xf32> to vector<8x128xf32>
    %200 = arith.mulf %199, %197 : vector<8x128xf32>
    %201 = arith.addf %187, %200 : vector<8x128xf32>
    %202 = vector.extract_strided_slice %1 {offsets = [0, 13], sizes = [8, 1], strides = [1, 1]} : vector<8x32xf32> to vector<8x1xf32>
    %203 = vector.broadcast %202 : vector<8x1xf32> to vector<8x128xf32>
    %204 = arith.mulf %203, %197 : vector<8x128xf32>
    %205 = arith.addf %191, %204 : vector<8x128xf32>
    %cst_33 = arith.constant 0.43225807 : f32
    %206 = vector.broadcast %cst_33 : f32 to vector<8x128xf32>
    %207 = arith.subf %7, %206 : vector<8x128xf32>
    %cst_34 = arith.constant -5.120000e+00 : f32
    %208 = vector.broadcast %cst_34 : f32 to vector<8x128xf32>
    %209 = arith.mulf %207, %208 : vector<8x128xf32>
    %210 = arith.mulf %209, %207 : vector<8x128xf32>
    %211 = math.exp %210 : vector<8x128xf32>
    %212 = vector.extract_strided_slice %0 {offsets = [0, 14], sizes = [8, 1], strides = [1, 1]} : vector<8x32xf32> to vector<8x1xf32>
    %213 = vector.broadcast %212 : vector<8x1xf32> to vector<8x128xf32>
    %214 = arith.mulf %213, %211 : vector<8x128xf32>
    %215 = arith.addf %201, %214 : vector<8x128xf32>
    %216 = vector.extract_strided_slice %1 {offsets = [0, 14], sizes = [8, 1], strides = [1, 1]} : vector<8x32xf32> to vector<8x1xf32>
    %217 = vector.broadcast %216 : vector<8x1xf32> to vector<8x128xf32>
    %218 = arith.mulf %217, %211 : vector<8x128xf32>
    %219 = arith.addf %205, %218 : vector<8x128xf32>
    %cst_35 = arith.constant 0.477419376 : f32
    %220 = vector.broadcast %cst_35 : f32 to vector<8x128xf32>
    %221 = arith.subf %7, %220 : vector<8x128xf32>
    %cst_36 = arith.constant -5.120000e+00 : f32
    %222 = vector.broadcast %cst_36 : f32 to vector<8x128xf32>
    %223 = arith.mulf %221, %222 : vector<8x128xf32>
    %224 = arith.mulf %223, %221 : vector<8x128xf32>
    %225 = math.exp %224 : vector<8x128xf32>
    %226 = vector.extract_strided_slice %0 {offsets = [0, 15], sizes = [8, 1], strides = [1, 1]} : vector<8x32xf32> to vector<8x1xf32>
    %227 = vector.broadcast %226 : vector<8x1xf32> to vector<8x128xf32>
    %228 = arith.mulf %227, %225 : vector<8x128xf32>
    %229 = arith.addf %215, %228 : vector<8x128xf32>
    %230 = vector.extract_strided_slice %1 {offsets = [0, 15], sizes = [8, 1], strides = [1, 1]} : vector<8x32xf32> to vector<8x1xf32>
    %231 = vector.broadcast %230 : vector<8x1xf32> to vector<8x128xf32>
    %232 = arith.mulf %231, %225 : vector<8x128xf32>
    %233 = arith.addf %219, %232 : vector<8x128xf32>
    %cst_37 = arith.constant 0.522580624 : f32
    %234 = vector.broadcast %cst_37 : f32 to vector<8x128xf32>
    %235 = arith.subf %7, %234 : vector<8x128xf32>
    %cst_38 = arith.constant -5.120000e+00 : f32
    %236 = vector.broadcast %cst_38 : f32 to vector<8x128xf32>
    %237 = arith.mulf %235, %236 : vector<8x128xf32>
    %238 = arith.mulf %237, %235 : vector<8x128xf32>
    %239 = math.exp %238 : vector<8x128xf32>
    %240 = vector.extract_strided_slice %0 {offsets = [0, 16], sizes = [8, 1], strides = [1, 1]} : vector<8x32xf32> to vector<8x1xf32>
    %241 = vector.broadcast %240 : vector<8x1xf32> to vector<8x128xf32>
    %242 = arith.mulf %241, %239 : vector<8x128xf32>
    %243 = arith.addf %229, %242 : vector<8x128xf32>
    %244 = vector.extract_strided_slice %1 {offsets = [0, 16], sizes = [8, 1], strides = [1, 1]} : vector<8x32xf32> to vector<8x1xf32>
    %245 = vector.broadcast %244 : vector<8x1xf32> to vector<8x128xf32>
    %246 = arith.mulf %245, %239 : vector<8x128xf32>
    %247 = arith.addf %233, %246 : vector<8x128xf32>
    %cst_39 = arith.constant 0.56774193 : f32
    %248 = vector.broadcast %cst_39 : f32 to vector<8x128xf32>
    %249 = arith.subf %7, %248 : vector<8x128xf32>
    %cst_40 = arith.constant -5.120000e+00 : f32
    %250 = vector.broadcast %cst_40 : f32 to vector<8x128xf32>
    %251 = arith.mulf %249, %250 : vector<8x128xf32>
    %252 = arith.mulf %251, %249 : vector<8x128xf32>
    %253 = math.exp %252 : vector<8x128xf32>
    %254 = vector.extract_strided_slice %0 {offsets = [0, 17], sizes = [8, 1], strides = [1, 1]} : vector<8x32xf32> to vector<8x1xf32>
    %255 = vector.broadcast %254 : vector<8x1xf32> to vector<8x128xf32>
    %256 = arith.mulf %255, %253 : vector<8x128xf32>
    %257 = arith.addf %243, %256 : vector<8x128xf32>
    %258 = vector.extract_strided_slice %1 {offsets = [0, 17], sizes = [8, 1], strides = [1, 1]} : vector<8x32xf32> to vector<8x1xf32>
    %259 = vector.broadcast %258 : vector<8x1xf32> to vector<8x128xf32>
    %260 = arith.mulf %259, %253 : vector<8x128xf32>
    %261 = arith.addf %247, %260 : vector<8x128xf32>
    %cst_41 = arith.constant 0.612903237 : f32
    %262 = vector.broadcast %cst_41 : f32 to vector<8x128xf32>
    %263 = arith.subf %7, %262 : vector<8x128xf32>
    %cst_42 = arith.constant -5.120000e+00 : f32
    %264 = vector.broadcast %cst_42 : f32 to vector<8x128xf32>
    %265 = arith.mulf %263, %264 : vector<8x128xf32>
    %266 = arith.mulf %265, %263 : vector<8x128xf32>
    %267 = math.exp %266 : vector<8x128xf32>
    %268 = vector.extract_strided_slice %0 {offsets = [0, 18], sizes = [8, 1], strides = [1, 1]} : vector<8x32xf32> to vector<8x1xf32>
    %269 = vector.broadcast %268 : vector<8x1xf32> to vector<8x128xf32>
    %270 = arith.mulf %269, %267 : vector<8x128xf32>
    %271 = arith.addf %257, %270 : vector<8x128xf32>
    %272 = vector.extract_strided_slice %1 {offsets = [0, 18], sizes = [8, 1], strides = [1, 1]} : vector<8x32xf32> to vector<8x1xf32>
    %273 = vector.broadcast %272 : vector<8x1xf32> to vector<8x128xf32>
    %274 = arith.mulf %273, %267 : vector<8x128xf32>
    %275 = arith.addf %261, %274 : vector<8x128xf32>
    %cst_43 = arith.constant 0.658064544 : f32
    %276 = vector.broadcast %cst_43 : f32 to vector<8x128xf32>
    %277 = arith.subf %7, %276 : vector<8x128xf32>
    %cst_44 = arith.constant -5.120000e+00 : f32
    %278 = vector.broadcast %cst_44 : f32 to vector<8x128xf32>
    %279 = arith.mulf %277, %278 : vector<8x128xf32>
    %280 = arith.mulf %279, %277 : vector<8x128xf32>
    %281 = math.exp %280 : vector<8x128xf32>
    %282 = vector.extract_strided_slice %0 {offsets = [0, 19], sizes = [8, 1], strides = [1, 1]} : vector<8x32xf32> to vector<8x1xf32>
    %283 = vector.broadcast %282 : vector<8x1xf32> to vector<8x128xf32>
    %284 = arith.mulf %283, %281 : vector<8x128xf32>
    %285 = arith.addf %271, %284 : vector<8x128xf32>
    %286 = vector.extract_strided_slice %1 {offsets = [0, 19], sizes = [8, 1], strides = [1, 1]} : vector<8x32xf32> to vector<8x1xf32>
    %287 = vector.broadcast %286 : vector<8x1xf32> to vector<8x128xf32>
    %288 = arith.mulf %287, %281 : vector<8x128xf32>
    %289 = arith.addf %275, %288 : vector<8x128xf32>
    %cst_45 = arith.constant 0.703225791 : f32
    %290 = vector.broadcast %cst_45 : f32 to vector<8x128xf32>
    %291 = arith.subf %7, %290 : vector<8x128xf32>
    %cst_46 = arith.constant -5.120000e+00 : f32
    %292 = vector.broadcast %cst_46 : f32 to vector<8x128xf32>
    %293 = arith.mulf %291, %292 : vector<8x128xf32>
    %294 = arith.mulf %293, %291 : vector<8x128xf32>
    %295 = math.exp %294 : vector<8x128xf32>
    %296 = vector.extract_strided_slice %0 {offsets = [0, 20], sizes = [8, 1], strides = [1, 1]} : vector<8x32xf32> to vector<8x1xf32>
    %297 = vector.broadcast %296 : vector<8x1xf32> to vector<8x128xf32>
    %298 = arith.mulf %297, %295 : vector<8x128xf32>
    %299 = arith.addf %285, %298 : vector<8x128xf32>
    %300 = vector.extract_strided_slice %1 {offsets = [0, 20], sizes = [8, 1], strides = [1, 1]} : vector<8x32xf32> to vector<8x1xf32>
    %301 = vector.broadcast %300 : vector<8x1xf32> to vector<8x128xf32>
    %302 = arith.mulf %301, %295 : vector<8x128xf32>
    %303 = arith.addf %289, %302 : vector<8x128xf32>
    %cst_47 = arith.constant 0.748387098 : f32
    %304 = vector.broadcast %cst_47 : f32 to vector<8x128xf32>
    %305 = arith.subf %7, %304 : vector<8x128xf32>
    %cst_48 = arith.constant -5.120000e+00 : f32
    %306 = vector.broadcast %cst_48 : f32 to vector<8x128xf32>
    %307 = arith.mulf %305, %306 : vector<8x128xf32>
    %308 = arith.mulf %307, %305 : vector<8x128xf32>
    %309 = math.exp %308 : vector<8x128xf32>
    %310 = vector.extract_strided_slice %0 {offsets = [0, 21], sizes = [8, 1], strides = [1, 1]} : vector<8x32xf32> to vector<8x1xf32>
    %311 = vector.broadcast %310 : vector<8x1xf32> to vector<8x128xf32>
    %312 = arith.mulf %311, %309 : vector<8x128xf32>
    %313 = arith.addf %299, %312 : vector<8x128xf32>
    %314 = vector.extract_strided_slice %1 {offsets = [0, 21], sizes = [8, 1], strides = [1, 1]} : vector<8x32xf32> to vector<8x1xf32>
    %315 = vector.broadcast %314 : vector<8x1xf32> to vector<8x128xf32>
    %316 = arith.mulf %315, %309 : vector<8x128xf32>
    %317 = arith.addf %303, %316 : vector<8x128xf32>
    %cst_49 = arith.constant 0.793548405 : f32
    %318 = vector.broadcast %cst_49 : f32 to vector<8x128xf32>
    %319 = arith.subf %7, %318 : vector<8x128xf32>
    %cst_50 = arith.constant -5.120000e+00 : f32
    %320 = vector.broadcast %cst_50 : f32 to vector<8x128xf32>
    %321 = arith.mulf %319, %320 : vector<8x128xf32>
    %322 = arith.mulf %321, %319 : vector<8x128xf32>
    %323 = math.exp %322 : vector<8x128xf32>
    %324 = vector.extract_strided_slice %0 {offsets = [0, 22], sizes = [8, 1], strides = [1, 1]} : vector<8x32xf32> to vector<8x1xf32>
    %325 = vector.broadcast %324 : vector<8x1xf32> to vector<8x128xf32>
    %326 = arith.mulf %325, %323 : vector<8x128xf32>
    %327 = arith.addf %313, %326 : vector<8x128xf32>
    %328 = vector.extract_strided_slice %1 {offsets = [0, 22], sizes = [8, 1], strides = [1, 1]} : vector<8x32xf32> to vector<8x1xf32>
    %329 = vector.broadcast %328 : vector<8x1xf32> to vector<8x128xf32>
    %330 = arith.mulf %329, %323 : vector<8x128xf32>
    %331 = arith.addf %317, %330 : vector<8x128xf32>
    %cst_51 = arith.constant 0.838709712 : f32
    %332 = vector.broadcast %cst_51 : f32 to vector<8x128xf32>
    %333 = arith.subf %7, %332 : vector<8x128xf32>
    %cst_52 = arith.constant -5.120000e+00 : f32
    %334 = vector.broadcast %cst_52 : f32 to vector<8x128xf32>
    %335 = arith.mulf %333, %334 : vector<8x128xf32>
    %336 = arith.mulf %335, %333 : vector<8x128xf32>
    %337 = math.exp %336 : vector<8x128xf32>
    %338 = vector.extract_strided_slice %0 {offsets = [0, 23], sizes = [8, 1], strides = [1, 1]} : vector<8x32xf32> to vector<8x1xf32>
    %339 = vector.broadcast %338 : vector<8x1xf32> to vector<8x128xf32>
    %340 = arith.mulf %339, %337 : vector<8x128xf32>
    %341 = arith.addf %327, %340 : vector<8x128xf32>
    %342 = vector.extract_strided_slice %1 {offsets = [0, 23], sizes = [8, 1], strides = [1, 1]} : vector<8x32xf32> to vector<8x1xf32>
    %343 = vector.broadcast %342 : vector<8x1xf32> to vector<8x128xf32>
    %344 = arith.mulf %343, %337 : vector<8x128xf32>
    %345 = arith.addf %331, %344 : vector<8x128xf32>
    %cst_53 = arith.constant 0.883870959 : f32
    %346 = vector.broadcast %cst_53 : f32 to vector<8x128xf32>
    %347 = arith.subf %7, %346 : vector<8x128xf32>
    %cst_54 = arith.constant -5.120000e+00 : f32
    %348 = vector.broadcast %cst_54 : f32 to vector<8x128xf32>
    %349 = arith.mulf %347, %348 : vector<8x128xf32>
    %350 = arith.mulf %349, %347 : vector<8x128xf32>
    %351 = math.exp %350 : vector<8x128xf32>
    %352 = vector.extract_strided_slice %0 {offsets = [0, 24], sizes = [8, 1], strides = [1, 1]} : vector<8x32xf32> to vector<8x1xf32>
    %353 = vector.broadcast %352 : vector<8x1xf32> to vector<8x128xf32>
    %354 = arith.mulf %353, %351 : vector<8x128xf32>
    %355 = arith.addf %341, %354 : vector<8x128xf32>
    %356 = vector.extract_strided_slice %1 {offsets = [0, 24], sizes = [8, 1], strides = [1, 1]} : vector<8x32xf32> to vector<8x1xf32>
    %357 = vector.broadcast %356 : vector<8x1xf32> to vector<8x128xf32>
    %358 = arith.mulf %357, %351 : vector<8x128xf32>
    %359 = arith.addf %345, %358 : vector<8x128xf32>
    %cst_55 = arith.constant 0.929032266 : f32
    %360 = vector.broadcast %cst_55 : f32 to vector<8x128xf32>
    %361 = arith.subf %7, %360 : vector<8x128xf32>
    %cst_56 = arith.constant -5.120000e+00 : f32
    %362 = vector.broadcast %cst_56 : f32 to vector<8x128xf32>
    %363 = arith.mulf %361, %362 : vector<8x128xf32>
    %364 = arith.mulf %363, %361 : vector<8x128xf32>
    %365 = math.exp %364 : vector<8x128xf32>
    %366 = vector.extract_strided_slice %0 {offsets = [0, 25], sizes = [8, 1], strides = [1, 1]} : vector<8x32xf32> to vector<8x1xf32>
    %367 = vector.broadcast %366 : vector<8x1xf32> to vector<8x128xf32>
    %368 = arith.mulf %367, %365 : vector<8x128xf32>
    %369 = arith.addf %355, %368 : vector<8x128xf32>
    %370 = vector.extract_strided_slice %1 {offsets = [0, 25], sizes = [8, 1], strides = [1, 1]} : vector<8x32xf32> to vector<8x1xf32>
    %371 = vector.broadcast %370 : vector<8x1xf32> to vector<8x128xf32>
    %372 = arith.mulf %371, %365 : vector<8x128xf32>
    %373 = arith.addf %359, %372 : vector<8x128xf32>
    %cst_57 = arith.constant 0.974193572 : f32
    %374 = vector.broadcast %cst_57 : f32 to vector<8x128xf32>
    %375 = arith.subf %7, %374 : vector<8x128xf32>
    %cst_58 = arith.constant -5.120000e+00 : f32
    %376 = vector.broadcast %cst_58 : f32 to vector<8x128xf32>
    %377 = arith.mulf %375, %376 : vector<8x128xf32>
    %378 = arith.mulf %377, %375 : vector<8x128xf32>
    %379 = math.exp %378 : vector<8x128xf32>
    %380 = vector.extract_strided_slice %0 {offsets = [0, 26], sizes = [8, 1], strides = [1, 1]} : vector<8x32xf32> to vector<8x1xf32>
    %381 = vector.broadcast %380 : vector<8x1xf32> to vector<8x128xf32>
    %382 = arith.mulf %381, %379 : vector<8x128xf32>
    %383 = arith.addf %369, %382 : vector<8x128xf32>
    %384 = vector.extract_strided_slice %1 {offsets = [0, 26], sizes = [8, 1], strides = [1, 1]} : vector<8x32xf32> to vector<8x1xf32>
    %385 = vector.broadcast %384 : vector<8x1xf32> to vector<8x128xf32>
    %386 = arith.mulf %385, %379 : vector<8x128xf32>
    %387 = arith.addf %373, %386 : vector<8x128xf32>
    %cst_59 = arith.constant 1.01935482 : f32
    %388 = vector.broadcast %cst_59 : f32 to vector<8x128xf32>
    %389 = arith.subf %7, %388 : vector<8x128xf32>
    %cst_60 = arith.constant -5.120000e+00 : f32
    %390 = vector.broadcast %cst_60 : f32 to vector<8x128xf32>
    %391 = arith.mulf %389, %390 : vector<8x128xf32>
    %392 = arith.mulf %391, %389 : vector<8x128xf32>
    %393 = math.exp %392 : vector<8x128xf32>
    %394 = vector.extract_strided_slice %0 {offsets = [0, 27], sizes = [8, 1], strides = [1, 1]} : vector<8x32xf32> to vector<8x1xf32>
    %395 = vector.broadcast %394 : vector<8x1xf32> to vector<8x128xf32>
    %396 = arith.mulf %395, %393 : vector<8x128xf32>
    %397 = arith.addf %383, %396 : vector<8x128xf32>
    %398 = vector.extract_strided_slice %1 {offsets = [0, 27], sizes = [8, 1], strides = [1, 1]} : vector<8x32xf32> to vector<8x1xf32>
    %399 = vector.broadcast %398 : vector<8x1xf32> to vector<8x128xf32>
    %400 = arith.mulf %399, %393 : vector<8x128xf32>
    %401 = arith.addf %387, %400 : vector<8x128xf32>
    %cst_61 = arith.constant 1.06451619 : f32
    %402 = vector.broadcast %cst_61 : f32 to vector<8x128xf32>
    %403 = arith.subf %7, %402 : vector<8x128xf32>
    %cst_62 = arith.constant -5.120000e+00 : f32
    %404 = vector.broadcast %cst_62 : f32 to vector<8x128xf32>
    %405 = arith.mulf %403, %404 : vector<8x128xf32>
    %406 = arith.mulf %405, %403 : vector<8x128xf32>
    %407 = math.exp %406 : vector<8x128xf32>
    %408 = vector.extract_strided_slice %0 {offsets = [0, 28], sizes = [8, 1], strides = [1, 1]} : vector<8x32xf32> to vector<8x1xf32>
    %409 = vector.broadcast %408 : vector<8x1xf32> to vector<8x128xf32>
    %410 = arith.mulf %409, %407 : vector<8x128xf32>
    %411 = arith.addf %397, %410 : vector<8x128xf32>
    %412 = vector.extract_strided_slice %1 {offsets = [0, 28], sizes = [8, 1], strides = [1, 1]} : vector<8x32xf32> to vector<8x1xf32>
    %413 = vector.broadcast %412 : vector<8x1xf32> to vector<8x128xf32>
    %414 = arith.mulf %413, %407 : vector<8x128xf32>
    %415 = arith.addf %401, %414 : vector<8x128xf32>
    %cst_63 = arith.constant 1.10967743 : f32
    %416 = vector.broadcast %cst_63 : f32 to vector<8x128xf32>
    %417 = arith.subf %7, %416 : vector<8x128xf32>
    %cst_64 = arith.constant -5.120000e+00 : f32
    %418 = vector.broadcast %cst_64 : f32 to vector<8x128xf32>
    %419 = arith.mulf %417, %418 : vector<8x128xf32>
    %420 = arith.mulf %419, %417 : vector<8x128xf32>
    %421 = math.exp %420 : vector<8x128xf32>
    %422 = vector.extract_strided_slice %0 {offsets = [0, 29], sizes = [8, 1], strides = [1, 1]} : vector<8x32xf32> to vector<8x1xf32>
    %423 = vector.broadcast %422 : vector<8x1xf32> to vector<8x128xf32>
    %424 = arith.mulf %423, %421 : vector<8x128xf32>
    %425 = arith.addf %411, %424 : vector<8x128xf32>
    %426 = vector.extract_strided_slice %1 {offsets = [0, 29], sizes = [8, 1], strides = [1, 1]} : vector<8x32xf32> to vector<8x1xf32>
    %427 = vector.broadcast %426 : vector<8x1xf32> to vector<8x128xf32>
    %428 = arith.mulf %427, %421 : vector<8x128xf32>
    %429 = arith.addf %415, %428 : vector<8x128xf32>
    %cst_65 = arith.constant 1.15483868 : f32
    %430 = vector.broadcast %cst_65 : f32 to vector<8x128xf32>
    %431 = arith.subf %7, %430 : vector<8x128xf32>
    %cst_66 = arith.constant -5.120000e+00 : f32
    %432 = vector.broadcast %cst_66 : f32 to vector<8x128xf32>
    %433 = arith.mulf %431, %432 : vector<8x128xf32>
    %434 = arith.mulf %433, %431 : vector<8x128xf32>
    %435 = math.exp %434 : vector<8x128xf32>
    %436 = vector.extract_strided_slice %0 {offsets = [0, 30], sizes = [8, 1], strides = [1, 1]} : vector<8x32xf32> to vector<8x1xf32>
    %437 = vector.broadcast %436 : vector<8x1xf32> to vector<8x128xf32>
    %438 = arith.mulf %437, %435 : vector<8x128xf32>
    %439 = arith.addf %425, %438 : vector<8x128xf32>
    %440 = vector.extract_strided_slice %1 {offsets = [0, 30], sizes = [8, 1], strides = [1, 1]} : vector<8x32xf32> to vector<8x1xf32>
    %441 = vector.broadcast %440 : vector<8x1xf32> to vector<8x128xf32>
    %442 = arith.mulf %441, %435 : vector<8x128xf32>
    %443 = arith.addf %429, %442 : vector<8x128xf32>
    %cst_67 = arith.constant 1.200000e+00 : f32
    %444 = vector.broadcast %cst_67 : f32 to vector<8x128xf32>
    %445 = arith.subf %7, %444 : vector<8x128xf32>
    %cst_68 = arith.constant -5.120000e+00 : f32
    %446 = vector.broadcast %cst_68 : f32 to vector<8x128xf32>
    %447 = arith.mulf %445, %446 : vector<8x128xf32>
    %448 = arith.mulf %447, %445 : vector<8x128xf32>
    %449 = math.exp %448 : vector<8x128xf32>
    %450 = vector.extract_strided_slice %0 {offsets = [0, 31], sizes = [8, 1], strides = [1, 1]} : vector<8x32xf32> to vector<8x1xf32>
    %451 = vector.broadcast %450 : vector<8x1xf32> to vector<8x128xf32>
    %452 = arith.mulf %451, %449 : vector<8x128xf32>
    %453 = arith.addf %439, %452 : vector<8x128xf32>
    %454 = vector.extract_strided_slice %1 {offsets = [0, 31], sizes = [8, 1], strides = [1, 1]} : vector<8x32xf32> to vector<8x1xf32>
    %455 = vector.broadcast %454 : vector<8x1xf32> to vector<8x128xf32>
    %456 = arith.mulf %455, %449 : vector<8x128xf32>
    %457 = arith.addf %443, %456 : vector<8x128xf32>
    %c0_69 = arith.constant 0 : index
    %458 = arith.index_cast %5 : i32 to index
    %459 = vector.load %arg1[%c0_69, %458] : memref<9x128xf32, #tpu.memory_space<vmem>>, vector<8x128xf32>
    %cst_70 = arith.constant 0.000000e+00 : f32
    %460 = vector.broadcast %cst_70 : f32 to vector<8x128xf32>
    %461 = arith.subf %460, %457 : vector<8x128xf32>
    %462 = math.exp %461 : vector<8x128xf32>
    %463 = arith.addf %7, %453 : vector<8x128xf32>
    %464 = arith.subf %459, %463 : vector<8x128xf32>
    %465 = arith.mulf %464, %462 : vector<8x128xf32>
    %cst_71 = arith.constant 0.000000e+00 : f32
    %466 = vector.broadcast %cst_71 : f32 to vector<8x128xf32>
    %467 = arith.subf %466, %457 : vector<8x128xf32>
    %cst_72 = arith.constant 0.918938517 : f32
    %468 = vector.broadcast %cst_72 : f32 to vector<8x128xf32>
    %469 = arith.subf %467, %468 : vector<8x128xf32>
    %470 = arith.mulf %465, %465 : vector<8x128xf32>
    %cst_73 = arith.constant 5.000000e-01 : f32
    %471 = vector.broadcast %cst_73 : f32 to vector<8x128xf32>
    %472 = arith.mulf %471, %470 : vector<8x128xf32>
    %473 = arith.subf %469, %472 : vector<8x128xf32>
    %c0_74 = arith.constant 0 : index
    %474 = arith.index_cast %5 : i32 to index
    %475 = vector.load %arg4[%c0_74, %474] : memref<8x128xf32, #tpu.memory_space<vmem>>, vector<8x128xf32>
    tpu.vector_store %arg4[%c0_74, %474], %473 {strides = array<i32>} : memref<8x128xf32, #tpu.memory_space<vmem>>, vector<8x128xf32>,
    %c1_i32_75 = arith.constant 1 : i32
    return
  }
  func.func @transform_0(%arg0: i32) -> (i32, i32) {
    %c0_i32 = arith.constant 0 : i32
    %c0_i32_0 = arith.constant 0 : i32
    return %c0_i32, %arg0 : i32, i32
  }
  func.func @transform_1(%arg0: i32) -> (i32, i32) {
    %c0_i32 = arith.constant 0 : i32
    %c0_i32_0 = arith.constant 0 : i32
    %c0_i32_1 = arith.constant 0 : i32
    return %c0_i32, %c0_i32_0 : i32, i32
  }
  func.func @transform_2(%arg0: i32) -> (i32, i32) {
    %c0_i32 = arith.constant 0 : i32
    %c0_i32_0 = arith.constant 0 : i32
    %c0_i32_1 = arith.constant 0 : i32
    return %c0_i32, %c0_i32_0 : i32, i32
  }
  func.func @transform_3(%arg0: i32) -> (i32, i32) {
    %c0_i32 = arith.constant 0 : i32
    %c0_i32_0 = arith.constant 0 : i32
    return %c0_i32, %arg0 : i32, i32
  }
}

</mosaic_0001>

<llo_original>
// kernel: tpu_custom_call.1
$region0: #{tpu_custom_call.1}
  #allocation0 [shape = 'u32[]', space=smem, size = 0x4, offset = 0x4, fixed_abs, tag = 'smem constant byte address 0x4 - core index']
  #allocation1 [shape = 'u32[72,128]{1,0:T(1,128)}', space=vmem, size = 0x9000, scoped, tag = 'internal scratch']
  %s0 = inlined_call_operand.hbm [shape: f32[9,128], index: 0, kind: input, shape index: {}]
  %s1 = inlined_call_operand.hbm [shape: f32[8,32], index: 1, kind: input, shape index: {}]
  %s2 = inlined_call_operand.hbm [shape: f32[8,32], index: 2, kind: input, shape index: {}]
  %s3 = inlined_call_operand.hbm [shape: f32[8,128], index: 3, kind: output, shape index: {}]
  %s4 = sld [smem:[#allocation0]]
  $region34: #{tpu_custom_call.1} parent=0
    _
  %s6 = ssub.s32 1, %s4
  %s7 = scalar_select 0, %s6, %s4
  $region1: #{tpu_custom_call.1} parent=0
    #allocation2 [shape = 'u8[8192]{0}', space=vmem, size = 0x2000, scoped, tag = 'input window, operand 0, single buffered']
    #allocation3 [shape = 's32[1]{0}', space=sflag, size = 0x4, scoped, tag = 'scoped memory for tpu_custom_call.1']
    #allocation4 [shape = 's32[1]{0}', space=sflag, size = 0x4, scoped, tag = 'scoped memory for tpu_custom_call.1']
    #allocation5 [shape = 'u8[4096]{0}', space=vmem, size = 0x1000, scoped, tag = 'input window, operand 1, single buffered']
    #allocation6 [shape = 's32[1]{0}', space=sflag, size = 0x4, scoped, tag = 'scoped memory for tpu_custom_call.1']
    #allocation7 [shape = 'u8[4096]{0}', space=vmem, size = 0x1000, scoped, tag = 'input window, operand 2, single buffered']
    #allocation8 [shape = 'u8[4096]{0}', space=vmem, size = 0x1000, scoped, tag = 'output window, operand 0, single buffered']
    %8 = vsyncpa [#allocation3], 0
    %9 = vsyncpa [#allocation6], 0
    %10 = vsyncpa [#allocation4], 0
    // Predicated region
    $region2: #{tpu_custom_call.1} parent=1 // pred_check
      _
    $region3: #{tpu_custom_call.1} parent=1 // pred_check_branch
      %12 = sbr.rel (0) target = $region5
    $region4: #{tpu_custom_call.1} parent=1 // pred_region
      %14 = vsyncadd [#allocation3], 0
      %s15 = sshll.u32 %s0, 4
      %s16 = int_to_ptr.hbm [resolvable:$true] %s15
      %s17 = sshll.u32 [#allocation2], 4
      %s18 = int_to_ptr.vmem [resolvable:$true] %s17
      %23 = dma.hbm_to_vmem [thread:$0]  %s16, 256, %s18, [#allocation3], 128, 128, 8
    $region5: #{tpu_custom_call.1} parent=1 // pred_fallthru
      _
    // Predicated region
    $region6: #{tpu_custom_call.1} parent=1 // pred_check
      _
    $region7: #{tpu_custom_call.1} parent=1 // pred_check_branch
      %25 = sbr.rel (0) target = $region9
    $region8: #{tpu_custom_call.1} parent=1 // pred_region
      %27 = vsyncadd [#allocation6], 0
      %s29 = sshll.u32 %s1, 4
      %s30 = int_to_ptr.hbm [resolvable:$true] %s29
      %s31 = sshll.u32 [#allocation5], 4
      %s32 = int_to_ptr.vmem [resolvable:$true] %s31
      %34 = dma.hbm_to_vmem [thread:$0]  %s30, 128, %s32, [#allocation6]
    $region9: #{tpu_custom_call.1} parent=1 // pred_fallthru
      _
    // Predicated region
    $region10: #{tpu_custom_call.1} parent=1 // pred_check
      _
    $region11: #{tpu_custom_call.1} parent=1 // pred_check_branch
      %36 = sbr.rel (0) target = $region13
    $region12: #{tpu_custom_call.1} parent=1 // pred_region
      %38 = vsyncadd [#allocation6], 0
      %s40 = sshll.u32 %s2, 4
      %s41 = int_to_ptr.hbm [resolvable:$true] %s40
      %s42 = sshll.u32 [#allocation7], 4
      %s43 = int_to_ptr.vmem [resolvable:$true] %s42
      %45 = dma.hbm_to_vmem [thread:$0]  %s41, 128, %s43, [#allocation6]
    $region13: #{tpu_custom_call.1} parent=1 // pred_fallthru
      _
    // Predicated region
    $region14: #{tpu_custom_call.1} parent=1 // pred_check
      _
    $region15: #{tpu_custom_call.1} parent=1 // pred_check_branch
      %47 = sbr.rel (0) target = $region17
    $region16: #{tpu_custom_call.1} parent=1 // pred_region
      %49 = dma.done [#allocation3], 256
    $region17: #{tpu_custom_call.1} parent=1 // pred_fallthru
      _
    // Predicated region
    $region18: #{tpu_custom_call.1} parent=1 // pred_check
      _
    $region19: #{tpu_custom_call.1} parent=1 // pred_check_branch
      %51 = sbr.rel (0) target = $region21
    $region20: #{tpu_custom_call.1} parent=1 // pred_region
      %53 = dma.done [#allocation6], 128
    $region21: #{tpu_custom_call.1} parent=1 // pred_fallthru
      _
    // Predicated region
    $region22: #{tpu_custom_call.1} parent=1 // pred_check
      _
    $region23: #{tpu_custom_call.1} parent=1 // pred_check_branch
      %55 = sbr.rel (0) target = $region25
    $region24: #{tpu_custom_call.1} parent=1 // pred_region
      %57 = dma.done [#allocation6], 128
    $region25: #{tpu_custom_call.1} parent=1 // pred_fallthru
      _
    %v58 = vld [vmem:[#allocation5] sm:$0xff]
    %v59 = vld [vmem:[#allocation7] sm:$0xff]
    %v60 = vld [vmem:[#allocation2 + $0x1] sm:$0xff]
    %v61 = vsub.f32 %v60, -0.2
    %v62 = vmul.f32 %v61, -5.12
    %v63 = vmul.f32 %v62, %v61
    %v64 = vmul.f32 %v63, 1.442695
    %v65 = vpow.pop %v64
    %67 = vset.pattern.permute.xlu0 0
    %68 = vperm.xlu0 %67, %v58
    %v69 = vpop.permute.xlu0 %68
    %v71 = vmul.f32 %v69, %v65
    %v72 = vadd.f32 %v71, 0.0
    %74 = vset.pattern.permute.xlu0 0
    %75 = vperm.xlu0 %74, %v59
    %v76 = vpop.permute.xlu0 %75
    %v78 = vmul.f32 %v76, %v65
    %v79 = vadd.f32 %v78, 0.0
    %v80 = vsub.f32 %v60, -0.15483871
    %v81 = vmul.f32 %v80, -5.12
    %v82 = vmul.f32 %v81, %v80
    %v83 = vmul.f32 %v82, 1.442695
    %v84 = vpow.pop %v83
    %85 = vset.pattern.permute.xlu0 1
    %86 = vperm.xlu0 %85, %v58
    %v87 = vpop.permute.xlu0 %86
    %v89 = vmul.f32 %v87, %v84
    %v90 = vadd.f32 %v72, %v89
    %91 = vset.pattern.permute.xlu0 1
    %92 = vperm.xlu0 %91, %v59
    %v93 = vpop.permute.xlu0 %92
    %v95 = vmul.f32 %v93, %v84
    %v96 = vadd.f32 %v79, %v95
    %v97 = vsub.f32 %v60, -0.10967742
    %v98 = vmul.f32 %v97, -5.12
    %v99 = vmul.f32 %v98, %v97
    %v100 = vmul.f32 %v99, 1.442695
    %v101 = vpow.pop %v100
    %102 = vset.pattern.permute.xlu0 2
    %103 = vperm.xlu0 %102, %v58
    %v104 = vpop.permute.xlu0 %103
    %v106 = vmul.f32 %v104, %v101
    %v107 = vadd.f32 %v90, %v106
    %108 = vset.pattern.permute.xlu0 2
    %109 = vperm.xlu0 %108, %v59
    %v110 = vpop.permute.xlu0 %109
    %v112 = vmul.f32 %v110, %v101
    %v113 = vadd.f32 %v96, %v112
    %v114 = vsub.f32 %v60, -0.06451612
    %v115 = vmul.f32 %v114, -5.12
    %v116 = vmul.f32 %v115, %v114
    %v117 = vmul.f32 %v116, 1.442695
    %v118 = vpow.pop %v117
    %119 = vset.pattern.permute.xlu0 3
    %120 = vperm.xlu0 %119, %v58
    %v121 = vpop.permute.xlu0 %120
    %v123 = vmul.f32 %v121, %v118
    %v124 = vadd.f32 %v107, %v123
    %125 = vset.pattern.permute.xlu0 3
    %126 = vperm.xlu0 %125, %v59
    %v127 = vpop.permute.xlu0 %126
    %v129 = vmul.f32 %v127, %v118
    %v130 = vadd.f32 %v113, %v129
    %v131 = vsub.f32 %v60, -0.019354835
    %v132 = vmul.f32 %v131, -5.12
    %v133 = vmul.f32 %v132, %v131
    %v134 = vmul.f32 %v133, 1.442695
    %v135 = vpow.pop %v134
    %136 = vset.pattern.permute.xlu0 4
    %137 = vperm.xlu0 %136, %v58
    %v138 = vpop.permute.xlu0 %137
    %v140 = vmul.f32 %v138, %v135
    %v141 = vadd.f32 %v124, %v140
    %142 = vset.pattern.permute.xlu0 4
    %143 = vperm.xlu0 %142, %v59
    %v144 = vpop.permute.xlu0 %143
    %v146 = vmul.f32 %v144, %v135
    %v147 = vadd.f32 %v130, %v146
    %v148 = vsub.f32 %v60, 0.02580645
    %v149 = vmul.f32 %v148, -5.12
    %v150 = vmul.f32 %v149, %v148
    %v151 = vmul.f32 %v150, 1.442695
    %v152 = vpow.pop %v151
    %153 = vset.pattern.permute.xlu0 5
    %154 = vperm.xlu0 %153, %v58
    %v155 = vpop.permute.xlu0 %154
    %v157 = vmul.f32 %v155, %v152
    %v158 = vadd.f32 %v141, %v157
    %159 = vset.pattern.permute.xlu0 5
    %160 = vperm.xlu0 %159, %v59
    %v161 = vpop.permute.xlu0 %160
    %v163 = vmul.f32 %v161, %v152
    %v164 = vadd.f32 %v147, %v163
    %v165 = vsub.f32 %v60, 0.070967734
    %v166 = vmul.f32 %v165, -5.12
    %v167 = vmul.f32 %v166, %v165
    %v168 = vmul.f32 %v167, 1.442695
    %v169 = vpow.pop %v168
    %170 = vset.pattern.permute.xlu0 6
    %171 = vperm.xlu0 %170, %v58
    %v172 = vpop.permute.xlu0 %171
    %v174 = vmul.f32 %v172, %v169
    %v175 = vadd.f32 %v158, %v174
    %176 = vset.pattern.permute.xlu0 6
    %177 = vperm.xlu0 %176, %v59
    %v178 = vpop.permute.xlu0 %177
    %v180 = vmul.f32 %v178, %v169
    %v181 = vadd.f32 %v164, %v180
    %v182 = vsub.f32 %v60, 0.11612903
    %v183 = vmul.f32 %v182, -5.12
    %v184 = vmul.f32 %v183, %v182
    %v185 = vmul.f32 %v184, 1.442695
    %v186 = vpow.pop %v185
    %187 = vset.pattern.permute.xlu0 7
    %188 = vperm.xlu0 %187, %v58
    %v189 = vpop.permute.xlu0 %188
    %v191 = vmul.f32 %v189, %v186
    %v192 = vadd.f32 %v175, %v191
    %193 = vset.pattern.permute.xlu0 7
    %194 = vperm.xlu0 %193, %v59
    %v195 = vpop.permute.xlu0 %194
    %v197 = vmul.f32 %v195, %v186
    %v198 = vadd.f32 %v181, %v197
    %v199 = vsub.f32 %v60, 0.16129032
    %v200 = vmul.f32 %v199, -5.12
    %v201 = vmul.f32 %v200, %v199
    %v202 = vmul.f32 %v201, 1.442695
    %v203 = vpow.pop %v202
    %204 = vset.pattern.permute.xlu0 8
    %205 = vperm.xlu0 %204, %v58
    %v206 = vpop.permute.xlu0 %205
    %v208 = vmul.f32 %v206, %v203
    %v209 = vadd.f32 %v192, %v208
    %210 = vset.pattern.permute.xlu0 8
    %211 = vperm.xlu0 %210, %v59
    %v212 = vpop.permute.xlu0 %211
    %v214 = vmul.f32 %v212, %v203
    %v215 = vadd.f32 %v198, %v214
    %v216 = vsub.f32 %v60, 0.2064516
    %v217 = vmul.f32 %v216, -5.12
    %v218 = vmul.f32 %v217, %v216
    %v219 = vmul.f32 %v218, 1.442695
    %v220 = vpow.pop %v219
    %221 = vset.pattern.permute.xlu0 9
    %222 = vperm.xlu0 %221, %v58
    %v223 = vpop.permute.xlu0 %222
    %v225 = vmul.f32 %v223, %v220
    %v226 = vadd.f32 %v209, %v225
    %227 = vset.pattern.permute.xlu0 9
    %228 = vperm.xlu0 %227, %v59
    %v229 = vpop.permute.xlu0 %228
    %v231 = vmul.f32 %v229, %v220
    %v232 = vadd.f32 %v215, %v231
    %v233 = vsub.f32 %v60, 0.2516129
    %v234 = vmul.f32 %v233, -5.12
    %v235 = vmul.f32 %v234, %v233
    %v236 = vmul.f32 %v235, 1.442695
    %v237 = vpow.pop %v236
    %238 = vset.pattern.permute.xlu0 10
    %239 = vperm.xlu0 %238, %v58
    %v240 = vpop.permute.xlu0 %239
    %v242 = vmul.f32 %v240, %v237
    %v243 = vadd.f32 %v226, %v242
    %244 = vset.pattern.permute.xlu0 10
    %245 = vperm.xlu0 %244, %v59
    %v246 = vpop.permute.xlu0 %245
    %v248 = vmul.f32 %v246, %v237
    %v249 = vadd.f32 %v232, %v248
    %v250 = vsub.f32 %v60, 0.2967742
    %v251 = vmul.f32 %v250, -5.12
    %v252 = vmul.f32 %v251, %v250
    %v253 = vmul.f32 %v252, 1.442695
    %v254 = vpow.pop %v253
    %255 = vset.pattern.permute.xlu0 11
    %256 = vperm.xlu0 %255, %v58
    %v257 = vpop.permute.xlu0 %256
    %v259 = vmul.f32 %v257, %v254
    %v260 = vadd.f32 %v243, %v259
    %261 = vset.pattern.permute.xlu0 11
    %262 = vperm.xlu0 %261, %v59
    %v263 = vpop.permute.xlu0 %262
    %v265 = vmul.f32 %v263, %v254
    %v266 = vadd.f32 %v249, %v265
    %v267 = vsub.f32 %v60, 0.3419355
    %v268 = vmul.f32 %v267, -5.12
    %v269 = vmul.f32 %v268, %v267
    %v270 = vmul.f32 %v269, 1.442695
    %v271 = vpow.pop %v270
    %272 = vset.pattern.permute.xlu0 12
    %273 = vperm.xlu0 %272, %v58
    %v274 = vpop.permute.xlu0 %273
    %v276 = vmul.f32 %v274, %v271
    %v277 = vadd.f32 %v260, %v276
    %278 = vset.pattern.permute.xlu0 12
    %279 = vperm.xlu0 %278, %v59
    %v280 = vpop.permute.xlu0 %279
    %v282 = vmul.f32 %v280, %v271
    %v283 = vadd.f32 %v266, %v282
    %v284 = vsub.f32 %v60, 0.38709676
    %v285 = vmul.f32 %v284, -5.12
    %v286 = vmul.f32 %v285, %v284
    %v287 = vmul.f32 %v286, 1.442695
    %v288 = vpow.pop %v287
    %289 = vset.pattern.permute.xlu0 13
    %290 = vperm.xlu0 %289, %v58
    %v291 = vpop.permute.xlu0 %290
    %v293 = vmul.f32 %v291, %v288
    %v294 = vadd.f32 %v277, %v293
    %295 = vset.pattern.permute.xlu0 13
    %296 = vperm.xlu0 %295, %v59
    %v297 = vpop.permute.xlu0 %296
    %v299 = vmul.f32 %v297, %v288
    %v300 = vadd.f32 %v283, %v299
    %v301 = vsub.f32 %v60, 0.43225807
    %v302 = vmul.f32 %v301, -5.12
    %v303 = vmul.f32 %v302, %v301
    %v304 = vmul.f32 %v303, 1.442695
    %v305 = vpow.pop %v304
    %306 = vset.pattern.permute.xlu0 14
    %307 = vperm.xlu0 %306, %v58
    %v308 = vpop.permute.xlu0 %307
    %v310 = vmul.f32 %v308, %v305
    %v311 = vadd.f32 %v294, %v310
    %312 = vset.pattern.permute.xlu0 14
    %313 = vperm.xlu0 %312, %v59
    %v314 = vpop.permute.xlu0 %313
    %v316 = vmul.f32 %v314, %v305
    %v317 = vadd.f32 %v300, %v316
    %v318 = vsub.f32 %v60, 0.47741938
    %v319 = vmul.f32 %v318, -5.12
    %v320 = vmul.f32 %v319, %v318
    %v321 = vmul.f32 %v320, 1.442695
    %v322 = vpow.pop %v321
    %323 = vset.pattern.permute.xlu0 15
    %324 = vperm.xlu0 %323, %v58
    %v325 = vpop.permute.xlu0 %324
    %v327 = vmul.f32 %v325, %v322
    %v328 = vadd.f32 %v311, %v327
    %329 = vset.pattern.permute.xlu0 15
    %330 = vperm.xlu0 %329, %v59
    %v331 = vpop.permute.xlu0 %330
    %v333 = vmul.f32 %v331, %v322
    %v334 = vadd.f32 %v317, %v333
    %v335 = vsub.f32 %v60, 0.5225806
    %v336 = vmul.f32 %v335, -5.12
    %v337 = vmul.f32 %v336, %v335
    %v338 = vmul.f32 %v337, 1.442695
    %v339 = vpow.pop %v338
    %340 = vset.pattern.permute.xlu0 16
    %341 = vperm.xlu0 %340, %v58
    %v342 = vpop.permute.xlu0 %341
    %v344 = vmul.f32 %v342, %v339
    %v345 = vadd.f32 %v328, %v344
    %346 = vset.pattern.permute.xlu0 16
    %347 = vperm.xlu0 %346, %v59
    %v348 = vpop.permute.xlu0 %347
    %v350 = vmul.f32 %v348, %v339
    %v351 = vadd.f32 %v334, %v350
    %v352 = vsub.f32 %v60, 0.56774193
    %v353 = vmul.f32 %v352, -5.12
    %v354 = vmul.f32 %v353, %v352
    %v355 = vmul.f32 %v354, 1.442695
    %v356 = vpow.pop %v355
    %357 = vset.pattern.permute.xlu0 17
    %358 = vperm.xlu0 %357, %v58
    %v359 = vpop.permute.xlu0 %358
    %v361 = vmul.f32 %v359, %v356
    %v362 = vadd.f32 %v345, %v361
    %363 = vset.pattern.permute.xlu0 17
    %364 = vperm.xlu0 %363, %v59
    %v365 = vpop.permute.xlu0 %364
    %v367 = vmul.f32 %v365, %v356
    %v368 = vadd.f32 %v351, %v367
    %v369 = vsub.f32 %v60, 0.61290324
    %v370 = vmul.f32 %v369, -5.12
    %v371 = vmul.f32 %v370, %v369
    %v372 = vmul.f32 %v371, 1.442695
    %v373 = vpow.pop %v372
    %374 = vset.pattern.permute.xlu0 18
    %375 = vperm.xlu0 %374, %v58
    %v376 = vpop.permute.xlu0 %375
    %v378 = vmul.f32 %v376, %v373
    %v379 = vadd.f32 %v362, %v378
    %380 = vset.pattern.permute.xlu0 18
    %381 = vperm.xlu0 %380, %v59
    %v382 = vpop.permute.xlu0 %381
    %v384 = vmul.f32 %v382, %v373
    %v385 = vadd.f32 %v368, %v384
    %v386 = vsub.f32 %v60, 0.65806454
    %v387 = vmul.f32 %v386, -5.12
    %v388 = vmul.f32 %v387, %v386
    %v389 = vmul.f32 %v388, 1.442695
    %v390 = vpow.pop %v389
    %391 = vset.pattern.permute.xlu0 19
    %392 = vperm.xlu0 %391, %v58
    %v393 = vpop.permute.xlu0 %392
    %v395 = vmul.f32 %v393, %v390
    %v396 = vadd.f32 %v379, %v395
    %397 = vset.pattern.permute.xlu0 19
    %398 = vperm.xlu0 %397, %v59
    %v399 = vpop.permute.xlu0 %398
    %v401 = vmul.f32 %v399, %v390
    %v402 = vadd.f32 %v385, %v401
    %v403 = vsub.f32 %v60, 0.7032258
    %v404 = vmul.f32 %v403, -5.12
    %v405 = vmul.f32 %v404, %v403
    %v406 = vmul.f32 %v405, 1.442695
    %v407 = vpow.pop %v406
    %408 = vset.pattern.permute.xlu0 20
    %409 = vperm.xlu0 %408, %v58
    %v410 = vpop.permute.xlu0 %409
    %v412 = vmul.f32 %v410, %v407
    %v413 = vadd.f32 %v396, %v412
    %414 = vset.pattern.permute.xlu0 20
    %415 = vperm.xlu0 %414, %v59
    %v416 = vpop.permute.xlu0 %415
    %v418 = vmul.f32 %v416, %v407
    %v419 = vadd.f32 %v402, %v418
    %v420 = vsub.f32 %v60, 0.7483871
    %v421 = vmul.f32 %v420, -5.12
    %v422 = vmul.f32 %v421, %v420
    %v423 = vmul.f32 %v422, 1.442695
    %v424 = vpow.pop %v423
    %425 = vset.pattern.permute.xlu0 21
    %426 = vperm.xlu0 %425, %v58
    %v427 = vpop.permute.xlu0 %426
    %v429 = vmul.f32 %v427, %v424
    %v430 = vadd.f32 %v413, %v429
    %431 = vset.pattern.permute.xlu0 21
    %432 = vperm.xlu0 %431, %v59
    %v433 = vpop.permute.xlu0 %432
    %v435 = vmul.f32 %v433, %v424
    %v436 = vadd.f32 %v419, %v435
    %v437 = vsub.f32 %v60, 0.7935484
    %v438 = vmul.f32 %v437, -5.12
    %v439 = vmul.f32 %v438, %v437
    %v440 = vmul.f32 %v439, 1.442695
    %v441 = vpow.pop %v440
    %442 = vset.pattern.permute.xlu0 22
    %443 = vperm.xlu0 %442, %v58
    %v444 = vpop.permute.xlu0 %443
    %v446 = vmul.f32 %v444, %v441
    %v447 = vadd.f32 %v430, %v446
    %448 = vset.pattern.permute.xlu0 22
    %449 = vperm.xlu0 %448, %v59
    %v450 = vpop.permute.xlu0 %449
    %v452 = vmul.f32 %v450, %v441
    %v453 = vadd.f32 %v436, %v452
    %v454 = vsub.f32 %v60, 0.8387097
    %v455 = vmul.f32 %v454, -5.12
    %v456 = vmul.f32 %v455, %v454
    %v457 = vmul.f32 %v456, 1.442695
    %v458 = vpow.pop %v457
    %459 = vset.pattern.permute.xlu0 23
    %460 = vperm.xlu0 %459, %v58
    %v461 = vpop.permute.xlu0 %460
    %v463 = vmul.f32 %v461, %v458
    %v464 = vadd.f32 %v447, %v463
    %465 = vset.pattern.permute.xlu0 23
    %466 = vperm.xlu0 %465, %v59
    %v467 = vpop.permute.xlu0 %466
    %v469 = vmul.f32 %v467, %v458
    %v470 = vadd.f32 %v453, %v469
    %v471 = vsub.f32 %v60, 0.88387096
    %v472 = vmul.f32 %v471, -5.12
    %v473 = vmul.f32 %v472, %v471
    %v474 = vmul.f32 %v473, 1.442695
    %v475 = vpow.pop %v474
    %476 = vset.pattern.permute.xlu0 24
    %477 = vperm.xlu0 %476, %v58
    %v478 = vpop.permute.xlu0 %477
    %v480 = vmul.f32 %v478, %v475
    %v481 = vadd.f32 %v464, %v480
    %482 = vset.pattern.permute.xlu0 24
    %483 = vperm.xlu0 %482, %v59
    %v484 = vpop.permute.xlu0 %483
    %v486 = vmul.f32 %v484, %v475
    %v487 = vadd.f32 %v470, %v486
    %v488 = vsub.f32 %v60, 0.92903227
    %v489 = vmul.f32 %v488, -5.12
    %v490 = vmul.f32 %v489, %v488
    %v491 = vmul.f32 %v490, 1.442695
    %v492 = vpow.pop %v491
    %493 = vset.pattern.permute.xlu0 25
    %494 = vperm.xlu0 %493, %v58
    %v495 = vpop.permute.xlu0 %494
    %v497 = vmul.f32 %v495, %v492
    %v498 = vadd.f32 %v481, %v497
    %499 = vset.pattern.permute.xlu0 25
    %500 = vperm.xlu0 %499, %v59
    %v501 = vpop.permute.xlu0 %500
    %v503 = vmul.f32 %v501, %v492
    %v504 = vadd.f32 %v487, %v503
    %v505 = vsub.f32 %v60, 0.9741936
    %v506 = vmul.f32 %v505, -5.12
    %v507 = vmul.f32 %v506, %v505
    %v508 = vmul.f32 %v507, 1.442695
    %v509 = vpow.pop %v508
    %510 = vset.pattern.permute.xlu0 26
    %511 = vperm.xlu0 %510, %v58
    %v512 = vpop.permute.xlu0 %511
    %v514 = vmul.f32 %v512, %v509
    %v515 = vadd.f32 %v498, %v514
    %516 = vset.pattern.permute.xlu0 26
    %517 = vperm.xlu0 %516, %v59
    %v518 = vpop.permute.xlu0 %517
    %v520 = vmul.f32 %v518, %v509
    %v521 = vadd.f32 %v504, %v520
    %v522 = vsub.f32 %v60, 1.0193548
    %v523 = vmul.f32 %v522, -5.12
    %v524 = vmul.f32 %v523, %v522
    %v525 = vmul.f32 %v524, 1.442695
    %v526 = vpow.pop %v525
    %527 = vset.pattern.permute.xlu0 27
    %528 = vperm.xlu0 %527, %v58
    %v529 = vpop.permute.xlu0 %528
    %v531 = vmul.f32 %v529, %v526
    %v532 = vadd.f32 %v515, %v531
    %533 = vset.pattern.permute.xlu0 27
    %534 = vperm.xlu0 %533, %v59
    %v535 = vpop.permute.xlu0 %534
    %v537 = vmul.f32 %v535, %v526
    %v538 = vadd.f32 %v521, %v537
    %v539 = vsub.f32 %v60, 1.0645162
    %v540 = vmul.f32 %v539, -5.12
    %v541 = vmul.f32 %v540, %v539
    %v542 = vmul.f32 %v541, 1.442695
    %v543 = vpow.pop %v542
    %544 = vset.pattern.permute.xlu0 28
    %545 = vperm.xlu0 %544, %v58
    %v546 = vpop.permute.xlu0 %545
    %v548 = vmul.f32 %v546, %v543
    %v549 = vadd.f32 %v532, %v548
    %550 = vset.pattern.permute.xlu0 28
    %551 = vperm.xlu0 %550, %v59
    %v552 = vpop.permute.xlu0 %551
    %v554 = vmul.f32 %v552, %v543
    %v555 = vadd.f32 %v538, %v554
    %v556 = vsub.f32 %v60, 1.1096774
    %v557 = vmul.f32 %v556, -5.12
    %v558 = vmul.f32 %v557, %v556
    %v559 = vmul.f32 %v558, 1.442695
    %v560 = vpow.pop %v559
    %561 = vset.pattern.permute.xlu0 29
    %562 = vperm.xlu0 %561, %v58
    %v563 = vpop.permute.xlu0 %562
    %v565 = vmul.f32 %v563, %v560
    %v566 = vadd.f32 %v549, %v565
    %567 = vset.pattern.permute.xlu0 29
    %568 = vperm.xlu0 %567, %v59
    %v569 = vpop.permute.xlu0 %568
    %v571 = vmul.f32 %v569, %v560
    %v572 = vadd.f32 %v555, %v571
    %v573 = vsub.f32 %v60, 1.1548387
    %v574 = vmul.f32 %v573, -5.12
    %v575 = vmul.f32 %v574, %v573
    %v576 = vmul.f32 %v575, 1.442695
    %v577 = vpow.pop %v576
    %578 = vset.pattern.permute.xlu0 30
    %579 = vperm.xlu0 %578, %v58
    %v580 = vpop.permute.xlu0 %579
    %v582 = vmul.f32 %v580, %v577
    %v583 = vadd.f32 %v566, %v582
    %584 = vset.pattern.permute.xlu0 30
    %585 = vperm.xlu0 %584, %v59
    %v586 = vpop.permute.xlu0 %585
    %v588 = vmul.f32 %v586, %v577
    %v589 = vadd.f32 %v572, %v588
    %v590 = vsub.f32 %v60, 1.2
    %v591 = vmul.f32 %v590, -5.12
    %v592 = vmul.f32 %v591, %v590
    %v593 = vmul.f32 %v592, 1.442695
    %v594 = vpow.pop %v593
    %595 = vset.pattern.permute.xlu0 31
    %596 = vperm.xlu0 %595, %v58
    %v597 = vpop.permute.xlu0 %596
    %v599 = vmul.f32 %v597, %v594
    %v600 = vadd.f32 %v583, %v599
    %601 = vset.pattern.permute.xlu0 31
    %602 = vperm.xlu0 %601, %v59
    %v603 = vpop.permute.xlu0 %602
    %v605 = vmul.f32 %v603, %v594
    %v606 = vadd.f32 %v589, %v605
    %v607 = vld [vmem:[#allocation2] sm:$0xff]
    %v608 = vsub.f32 0.0, %v606
    %v609 = vmul.f32 %v608, 1.442695
    %v610 = vpow.pop %v609
    %v611 = vadd.f32 %v60, %v600
    %v612 = vsub.f32 %v607, %v611
    %v613 = vmul.f32 %v612, %v610
    %v614 = vsub.f32 %v608, 0.9189385
    %v615 = vmul.f32 %v613, %v613
    %v616 = vmul.f32 %v615, 0.5
    %v617 = vsub.f32 %v614, %v616
    %618 = vst [vmem:[#allocation8] sm:$0xff] %v617
    // Predicated region
    $region26: #{tpu_custom_call.1} parent=1 // pred_check
      _
    $region27: #{tpu_custom_call.1} parent=1 // pred_check_branch
      %620 = sbr.rel (0) target = $region29
    $region28: #{tpu_custom_call.1} parent=1 // pred_region
      %622 = vsyncadd [#allocation4], 0
      %s624 = sshll.u32 [#allocation8], 4
      %s625 = int_to_ptr.vmem [resolvable:$true] %s624
      %s626 = sshll.u32 %s3, 4
      %s627 = int_to_ptr.hbm [resolvable:$true] %s626
      %629 = dma.vmem_to_hbm [thread:$0]  %s625, 128, %s627, [#allocation4]
    $region29: #{tpu_custom_call.1} parent=1 // pred_fallthru
      _
    // Predicated region
    $region30: #{tpu_custom_call.1} parent=1 // pred_check
      _
    $region31: #{tpu_custom_call.1} parent=1 // pred_check_branch
      %631 = sbr.rel (0) target = $region33
    $region32: #{tpu_custom_call.1} parent=1 // pred_region
      %633 = dma.done [#allocation4], 128
    $region33: #{tpu_custom_call.1} parent=1 // pred_fallthru
      _
    %634 = vsyncpa [#allocation3], 1
    %635 = vsyncpa [#allocation6], 1
    %636 = vsyncpa [#allocation4], 1

</llo_original>
